<compile_context>
chip_gen: v7x
topology: tpu7x:2x2x1
jax: 0.10.0
libtpu: 0.0.40
codegen_flags: <defaults>
</compile_context>

<pallas_src>
import functools
import re

import jax
import jax.numpy as jnp
from jax import lax
from jax.experimental import pallas as pl
from jax.experimental.pallas import tpu as pltpu


def _round_up(x, m):
    return ((x + m - 1) // m) * m


def _cdiv(a, b):
    return (a + b - 1) // b


def _tpu_generation():
    """Best-effort TPU generation (5, 6, 7, ...) from device_kind; None if unknown."""
    try:
        kind = jax.devices()[0].device_kind
    except Exception:
        return None
    m = re.search(r"(\d+)", kind)
    return int(m.group(1)) if m else None


def _default_config():
    """Generation-aware defaults: (gen, matmul_dtype, tanh_dtype, vmem_limit_bytes)."""
    gen = _tpu_generation()
    if gen is not None and gen >= 6:
        # v6e / v7x: MXU, VPU, EUP are natively bf16 -> bf16 matmul inputs + bf16
        # tanh (accumulation and bias adds stay f32 inside the kernel).
        matmul_dtype, tanh_dtype = jnp.bfloat16, jnp.bfloat16
    else:
        # v5e and older: no bf16 VPU/EUP -> keep everything f32.
        matmul_dtype, tanh_dtype = jnp.float32, jnp.float32
    if gen is None:
        vmem_limit = None                   # unknown chip: leave compiler default
    elif gen >= 7:
        vmem_limit = 48 * 1024 * 1024       # v7x: 64 MiB physical VMEM
    else:
        vmem_limit = 100 * 1024 * 1024      # v5e/v6e: 128 MiB physical VMEM
    return gen, matmul_dtype, tanh_dtype, vmem_limit


def _value_critic_kernel(obs_ref, *refs, n_layers, matmul_dtype, tanh_dtype):
    """One batch tile of the MLP.

    obs_ref: (ob_dim, bt) in matmul_dtype (batch on the lane axis). Hidden
    activations are carried as (H, bt) so the output store is lane-dense.
    """
    *layer_refs, w_out_ref, b_out_ref, out_ref = refs

    h = obs_ref[...]                                           # (ob_dim, bt)
    for l in range(n_layers):
        w_ref = layer_refs[2 * l]                              # (H, fan_in) matmul_dtype
        b_ref = layer_refs[2 * l + 1]                          # (H, 1) f32
        z = lax.dot_general(                                   # MXU, f32 accumulation
            w_ref[...], h.astype(matmul_dtype),
            (((1,), (0,)), ((), ())),
            preferred_element_type=jnp.float32)                # (H, bt) f32
        h = jnp.tanh((z + b_ref[...]).astype(tanh_dtype))      # EUP tanh

    # Output layer (fan_out=1): VPU multiply + sublane (XLU) reduce, not a
    # 1-column MXU matmul; scalar bias lives in SMEM.
    v = jnp.sum(w_out_ref[...] * h.astype(jnp.float32), axis=0, keepdims=True)
    out_ref[...] = (v + b_out_ref[0]).astype(out_ref.dtype)    # (1, bt) lane-dense


def value_critic_forward(obs, params, *, batch_tile=None, matmul_dtype=None,
                         tanh_dtype=None, vmem_limit_bytes=None):
    """obs: [B, ob_dim] f32; params from init_value_critic_params. -> [B, 1] f32."""
    B, ob_dim = obs.shape
    gen, d_mm, d_tanh, d_vmem = _default_config()
    matmul_dtype = d_mm if matmul_dtype is None else matmul_dtype
    tanh_dtype = d_tanh if tanh_dtype is None else tanh_dtype
    vmem_limit_bytes = d_vmem if vmem_limit_bytes is None else vmem_limit_bytes

    ws = [w.astype(matmul_dtype) for w in params["ws"]]        # cast once in wrapper
    bs = list(params["bs"])                                    # f32 (H, 1)
    w_out, b_out = params["w_out"], params["b_out"]            # f32 (H, 1), (1,)
    n_layers = len(ws)
    H = ws[0].shape[0]

    # Batch tile: lane-aligned, multiple of 256 (full MXU N tile on v6e/v7x), large
    # enough to amortize per-grid-step overhead. On v7x keep >= 2 tiles so the
    # "parallel" batch axis shards across both TensorCores.
    if batch_tile is None:
        batch_tile = min(2048, _round_up(B, 256))
        if gen is not None and gen >= 7 and B > 256:
            batch_tile = min(batch_tile, _round_up(_cdiv(B, 2), 256))
    batch_tile = max(128, _round_up(batch_tile, 128))
    num_tiles = _cdiv(B, batch_tile)
    B_pad = num_tiles * batch_tile

    # Lane-dense obs: (ob_dim, B_pad), cast fused into the same wrapper pass, so
    # the only per-step DMA stream is unpadded and transpose-free on the MXU feed.
    obs_t = obs.astype(matmul_dtype).T
    if B_pad != B:
        obs_t = jnp.pad(obs_t, ((0, 0), (0, B_pad - B)))

    # Grid-invariant operands: full-array blocks (never re-DMAed). Large weight
    # matrices drop to a single VMEM buffer (the default double-buffer's dead
    # second copy matters under v7x's 64 MiB VMEM at layer_size >= ~1024).
    single_buffer_weights = (H * H * jnp.dtype(matmul_dtype).itemsize) >= (2 << 20)

    def const_spec(shape, big=False):
        if big and single_buffer_weights:
            return pl.BlockSpec(shape, lambda i: (0, 0), pipeline_mode=pl.Buffered(1))
        return pl.BlockSpec(shape, lambda i: (0, 0))

    in_specs = [pl.BlockSpec((ob_dim, batch_tile), lambda i: (0, i))]
    inputs = [obs_t]
    for w, b in zip(ws, bs):
        in_specs += [const_spec(w.shape, big=True), const_spec(b.shape)]
        inputs += [w, b]
    in_specs += [const_spec(w_out.shape),
                 pl.BlockSpec(memory_space=pltpu.MemorySpace.SMEM)]
    inputs += [w_out, b_out]

    # Advisory cost hint so XLA schedules/overlaps the custom call well.
    flops = 2 * B_pad * (H * ob_dim + (n_layers - 1) * H * H + H)
    transcendentals = n_layers * B_pad * H
    bytes_accessed = int(sum(int(a.size) * a.dtype.itemsize for a in inputs) + B_pad * 4)
    cost = pl.CostEstimate(flops=int(flops), transcendentals=int(transcendentals),
                           bytes_accessed=bytes_accessed)

    def kernel(*refs):
        return _value_critic_kernel(*refs, n_layers=n_layers,
                                    matmul_dtype=matmul_dtype, tanh_dtype=tanh_dtype)

    out = pl.pallas_call(
        kernel,
        out_shape=jax.ShapeDtypeStruct((1, B_pad), jnp.float32),
        grid_spec=pltpu.PrefetchScalarGridSpec(
            num_scalar_prefetch=0,
            grid=(num_tiles,),
            in_specs=in_specs,
            out_specs=pl.BlockSpec((1, batch_tile), lambda i: (0, i)),
        ),
        compiler_params=pltpu.CompilerParams(
            dimension_semantics=("parallel",),
            vmem_limit_bytes=vmem_limit_bytes,
        ),
        cost_estimate=cost,
    )(*inputs)

    # Lane-dense (1, B_pad) -> [B, 1]; pure layout plumbing.
    return out[0, :B].reshape(B, 1)


def init_value_critic_params(key, ob_dim, n_layers, layer_size):
    """torch.nn.Linear-style init (uniform +/- 1/sqrt(fan_in)), n_layers hidden tanh layers."""
    sizes = [ob_dim] + [layer_size] * n_layers
    ks = jax.random.split(key, 2 * n_layers + 2)

    def linear(kw, kb, fan_in, fan_out):
        bound = float(fan_in) ** -0.5
        w = jax.random.uniform(kw, (fan_out, fan_in), jnp.float32, -bound, bound)
        b = jax.random.uniform(kb, (fan_out, 1), jnp.float32, -bound, bound)
        return w, b

    ws, bs = [], []
    for l in range(n_layers):
        w, b = linear(ks[2 * l], ks[2 * l + 1], sizes[l], sizes[l + 1])
        ws.append(w)
        bs.append(b)
    w_out, b_out = linear(ks[-2], ks[-1], layer_size, 1)          # (1, H), (1, 1)
    return {"ws": ws, "bs": bs,
            "w_out": w_out.reshape(layer_size, 1), "b_out": b_out.reshape(1)}


def value_critic_ref(obs, params, matmul_dtype=jnp.float32, tanh_dtype=jnp.float32):
    """Pure-JAX reference with the same cast sequence as the kernel."""
    h = obs
    for w, b in zip(params["ws"], params["bs"]):
        z = jnp.einsum("bk,hk->bh", h.astype(matmul_dtype), w.astype(matmul_dtype),
                       preferred_element_type=jnp.float32,
                       precision=lax.Precision.HIGHEST) + b[:, 0]
        h = jnp.tanh(z.astype(tanh_dtype))
    h32 = h.astype(jnp.float32)
    v = jnp.sum(h32 * params["w_out"][:, 0][None, :], axis=-1, keepdims=True)
    return v + params["b_out"]


if __name__ == "__main__":
    # Small shapes consistent with the module: obs [batch, ob_dim].
    batch, ob_dim, n_layers, layer_size = 8, 16, 2, 32

    key = jax.random.PRNGKey(0)
    k_obs, k_params, k_big = jax.random.split(key, 3)
    obs = jax.random.normal(k_obs, (batch, ob_dim), dtype=jnp.float32)
    params = init_value_critic_params(k_params, ob_dim, n_layers, layer_size)

    # 1) Explicit f32 path (valid on every TPU generation).
    v32 = jax.block_until_ready(value_critic_forward(
        obs, params, matmul_dtype=jnp.float32, tanh_dtype=jnp.float32))
    r32 = value_critic_ref(obs, params, jnp.float32, jnp.float32)
    assert v32.shape == (batch, 1), v32.shape
    assert jnp.allclose(v32, r32, atol=5e-4, rtol=5e-4), (
        float(jnp.max(jnp.abs(v32 - r32))))

    # 2) Generation-default path (bf16 matmul/tanh on v6e/v7x, f32 on v5e & older),
    #    compared against a cast-matched reference.
    _, mm_dt, th_dt, _ = _default_config()
    v_def = jax.block_until_ready(value_critic_forward(obs, params))
    r_def = value_critic_ref(obs, params, mm_dt, th_dt)
    tol = 3e-2 if jnp.dtype(mm_dt) == jnp.dtype(jnp.bfloat16) else 5e-4
    assert jnp.allclose(v_def, r_def, atol=tol, rtol=tol), (
        float(jnp.max(jnp.abs(v_def - r_def))))

    # 3) Ragged, multi-tile batch exercising the grid / padding / lane-dense output.
    obs_big = jax.random.normal(k_big, (1000, ob_dim), dtype=jnp.float32)
    v_big = jax.block_until_ready(value_critic_forward(
        obs_big, params, matmul_dtype=jnp.float32, tanh_dtype=jnp.float32,
        batch_tile=256))
    r_big = value_critic_ref(obs_big, params, jnp.float32, jnp.float32)
    assert v_big.shape == (1000, 1), v_big.shape
    assert jnp.allclose(v_big, r_big, atol=5e-4, rtol=5e-4), (
        float(jnp.max(jnp.abs(v_big - r_big))))

    # TODO(synk): ValueCritic.update() (MSE loss + Adam step) is training code,
    # not part of forward(), and is not implemented as a kernel here.
    print("KERNEL_OK")
</pallas_src>

<mosaic_0001>
module attributes {stable_mosaic.version = 11 : i64} {
  func.func @kernel(%arg0: i32, %arg1: memref<16x256xf32, #tpu.memory_space<vmem>>, %arg2: memref<32x16xf32, #tpu.memory_space<vmem>>, %arg3: memref<32x1xf32, #tpu.memory_space<vmem>>, %arg4: memref<32x32xf32, #tpu.memory_space<vmem>>, %arg5: memref<32x1xf32, #tpu.memory_space<vmem>>, %arg6: memref<32x1xf32, #tpu.memory_space<vmem>>, %arg7: memref<1xf32, #tpu.memory_space<smem>>, %arg8: memref<1x256xf32, #tpu.memory_space<vmem>>) attributes {dimension_semantics = [#tpu.dimension_semantics<parallel>], iteration_bounds = array<i64: 1>, scalar_prefetch = 0 : i64, scratch_operands = 0 : i64, tpu.core_type = #tpu.core_type<tc>, window_params = [{transform_indices = @transform_0, window_bounds = array<i64: 16, 256>}, {pipeline_mode = #tpu.pipeline_mode<synchronous>, transform_indices = @transform_1, window_bounds = array<i64: 32, 16>}, {pipeline_mode = #tpu.pipeline_mode<synchronous>, transform_indices = @transform_2, window_bounds = array<i64: 32, 1>}, {pipeline_mode = #tpu.pipeline_mode<synchronous>, transform_indices = @transform_3, window_bounds = array<i64: 32, 32>}, {pipeline_mode = #tpu.pipeline_mode<synchronous>, transform_indices = @transform_4, window_bounds = array<i64: 32, 1>}, {pipeline_mode = #tpu.pipeline_mode<synchronous>, transform_indices = @transform_5, window_bounds = array<i64: 32, 1>}, {transform_indices = @transform_6, window_bounds = array<i64: 1>}, {transform_indices = @transform_7, window_bounds = array<i64: 1, 256>}]} {
    %c0 = arith.constant 0 : index
    %c0_0 = arith.constant 0 : index
    %0 = vector.load %arg1[%c0, %c0_0] : memref<16x256xf32, #tpu.memory_space<vmem>>, vector<16x256xf32>
    %c0_1 = arith.constant 0 : index
    %c0_2 = arith.constant 0 : index
    %1 = vector.load %arg2[%c0_1, %c0_2] : memref<32x16xf32, #tpu.memory_space<vmem>>, vector<32x16xf32>
    %cst = arith.constant dense<0.000000e+00> : vector<32x256xf32>
    %2 = tpu.matmul %1, %0, %cst {dimension_numbers = #tpu.dot_dimension_numbers<[1], [0], [0], [1], [0, 0, 1, 1], [], []>} : vector<32x16xf32>, vector<16x256xf32>, vector<32x256xf32> -> vector<32x256xf32>
    %c0_3 = arith.constant 0 : index
    %c0_4 = arith.constant 0 : index
    %3 = vector.load %arg3[%c0_3, %c0_4] : memref<32x1xf32, #tpu.memory_space<vmem>>, vector<32x1xf32>
    %4 = vector.broadcast %3 : vector<32x1xf32> to vector<32x256xf32>
    %5 = arith.addf %2, %4 : vector<32x256xf32>
    %6 = math.tanh %5 : vector<32x256xf32>
    %c0_5 = arith.constant 0 : index
    %c0_6 = arith.constant 0 : index
    %7 = vector.load %arg4[%c0_5, %c0_6] : memref<32x32xf32, #tpu.memory_space<vmem>>, vector<32x32xf32>
    %cst_7 = arith.constant dense<0.000000e+00> : vector<32x256xf32>
    %8 = tpu.matmul %7, %6, %cst_7 {dimension_numbers = #tpu.dot_dimension_numbers<[1], [0], [0], [1], [0, 0, 1, 1], [], []>} : vector<32x32xf32>, vector<32x256xf32>, vector<32x256xf32> -> vector<32x256xf32>
    %c0_8 = arith.constant 0 : index
    %c0_9 = arith.constant 0 : index
    %9 = vector.load %arg5[%c0_8, %c0_9] : memref<32x1xf32, #tpu.memory_space<vmem>>, vector<32x1xf32>
    %10 = vector.broadcast %9 : vector<32x1xf32> to vector<32x256xf32>
    %11 = arith.addf %8, %10 : vector<32x256xf32>
    %12 = math.tanh %11 : vector<32x256xf32>
    %c0_10 = arith.constant 0 : index
    %c0_11 = arith.constant 0 : index
    %13 = vector.load %arg6[%c0_10, %c0_11] : memref<32x1xf32, #tpu.memory_space<vmem>>, vector<32x1xf32>
    %14 = vector.broadcast %13 : vector<32x1xf32> to vector<32x256xf32>
    %15 = arith.mulf %14, %12 : vector<32x256xf32>
    %cst_12 = arith.constant dense<0.000000e+00> : vector<256xf32>
    %16 = vector.multi_reduction <add>, %15, %cst_12 [0] : vector<32x256xf32> to vector<256xf32>
    %17 = vector.shape_cast %16 : vector<256xf32> to vector<1x256xf32>
    %c0_13 = arith.constant 0 : index
    %18 = memref.load %arg7[%c0_13] : memref<1xf32, #tpu.memory_space<smem>>
    %19 = vector.broadcast %18 : f32 to vector<1x256xf32>
    %20 = arith.addf %17, %19 : vector<1x256xf32>
    %c0_14 = arith.constant 0 : index
    %c0_15 = arith.constant 0 : index
    %21 = vector.load %arg8[%c0_14, %c0_15] : memref<1x256xf32, #tpu.memory_space<vmem>>, vector<1x256xf32>
    tpu.vector_store %arg8[%c0_14, %c0_15], %20 {strides = array<i32>} : memref<1x256xf32, #tpu.memory_space<vmem>>, vector<1x256xf32>,
    return
  }
  func.func @transform_0(%arg0: i32) -> (i32, i32) {
    %c0_i32 = arith.constant 0 : i32
    %c0_i32_0 = arith.constant 0 : i32
    return %c0_i32, %arg0 : i32, i32
  }
  func.func @transform_1(%arg0: i32) -> (i32, i32) {
    %c0_i32 = arith.constant 0 : i32
    %c0_i32_0 = arith.constant 0 : i32
    %c0_i32_1 = arith.constant 0 : i32
    return %c0_i32, %c0_i32_0 : i32, i32
  }
  func.func @transform_2(%arg0: i32) -> (i32, i32) {
    %c0_i32 = arith.constant 0 : i32
    %c0_i32_0 = arith.constant 0 : i32
    %c0_i32_1 = arith.constant 0 : i32
    return %c0_i32, %c0_i32_0 : i32, i32
  }
  func.func @transform_3(%arg0: i32) -> (i32, i32) {
    %c0_i32 = arith.constant 0 : i32
    %c0_i32_0 = arith.constant 0 : i32
    %c0_i32_1 = arith.constant 0 : i32
    return %c0_i32, %c0_i32_0 : i32, i32
  }
  func.func @transform_4(%arg0: i32) -> (i32, i32) {
    %c0_i32 = arith.constant 0 : i32
    %c0_i32_0 = arith.constant 0 : i32
    %c0_i32_1 = arith.constant 0 : i32
    return %c0_i32, %c0_i32_0 : i32, i32
  }
  func.func @transform_5(%arg0: i32) -> (i32, i32) {
    %c0_i32 = arith.constant 0 : i32
    %c0_i32_0 = arith.constant 0 : i32
    %c0_i32_1 = arith.constant 0 : i32
    return %c0_i32, %c0_i32_0 : i32, i32
  }
  func.func @transform_6(%arg0: i32) -> i32 {
    %c0_i32 = arith.constant 0 : i32
    %c0_i32_0 = arith.constant 0 : i32
    return %c0_i32 : i32
  }
  func.func @transform_7(%arg0: i32) -> (i32, i32) {
    %c0_i32 = arith.constant 0 : i32
    %c0_i32_0 = arith.constant 0 : i32
    return %c0_i32, %arg0 : i32, i32
  }
}

</mosaic_0001>

<llo_original>
// kernel: tpu_custom_call.1
$region0: #{tpu_custom_call.1}
  #allocation0 [shape = 'u32[]', space=smem, size = 0x4, offset = 0x4, fixed_abs, tag = 'smem constant byte address 0x4 - core index']
  #allocation1 [shape = 'u32[144,128]{1,0:T(1,128)}', space=vmem, size = 0x12000, scoped, tag = 'internal scratch']
  #allocation2 [shape = 'f32[1]{0:T(128)S(6)}', space=smem, size = 0x200, scoped, tag = 'scoped memory for tpu_custom_call.1']
  %s0 = inlined_call_operand.vmem [shape: f32[16,256], index: 0, kind: input, shape index: {}]
  %s1 = inlined_call_operand.vmem [shape: f32[32,16], index: 1, kind: input, shape index: {}]
  %s2 = inlined_call_operand.vmem [shape: f32[32,1], index: 2, kind: input, shape index: {}]
  %s3 = inlined_call_operand.vmem [shape: f32[32,32], index: 3, kind: input, shape index: {}]
  %s4 = inlined_call_operand.vmem [shape: f32[32,1], index: 4, kind: input, shape index: {}]
  %s5 = inlined_call_operand.vmem [shape: f32[32,1], index: 5, kind: input, shape index: {}]
  %s6 = inlined_call_operand.<no memory space> [shape: f32[1], index: 6, kind: input, shape index: {}]
  %s7 = inlined_call_operand.hbm [shape: f32[1,256], index: 7, kind: output, shape index: {}]
  %s8 = sld [smem:[#allocation0]]
  $region38: #{tpu_custom_call.1} parent=0
    _
  %s10 = ssub.s32 1, %s8
  %s11 = scalar_select 0, %s10, %s8
  %12 = sst [smem:[#allocation2]] %s6
  $region1: #{tpu_custom_call.1} parent=0
    #allocation3 [shape = 'u8[1024]{0}', space=vmem, size = 0x400, scoped, tag = 'output window, operand 0, single buffered']
    #allocation4 [shape = 's32[1]{0}', space=sflag, size = 0x4, scoped, tag = 'scoped memory for tpu_custom_call.1']
    %13 = vsyncpa [#allocation4], 0
    // Predicated region
    $region2: #{tpu_custom_call.1} parent=1 // pred_check
      _
    $region3: #{tpu_custom_call.1} parent=1 // pred_check_branch
      %15 = sbr.rel (0) target = $region5
    $region4: #{tpu_custom_call.1} parent=1 // pred_region
      _
    $region5: #{tpu_custom_call.1} parent=1 // pred_fallthru
      _
    // Predicated region
    $region6: #{tpu_custom_call.1} parent=1 // pred_check
      _
    $region7: #{tpu_custom_call.1} parent=1 // pred_check_branch
      %17 = sbr.rel (0) target = $region9
    $region8: #{tpu_custom_call.1} parent=1 // pred_region
      _
    $region9: #{tpu_custom_call.1} parent=1 // pred_fallthru
      _
    // Predicated region
    $region10: #{tpu_custom_call.1} parent=1 // pred_check
      _
    $region11: #{tpu_custom_call.1} parent=1 // pred_check_branch
      %19 = sbr.rel (0) target = $region13
    $region12: #{tpu_custom_call.1} parent=1 // pred_region
      _
    $region13: #{tpu_custom_call.1} parent=1 // pred_fallthru
      _
    // Predicated region
    $region14: #{tpu_custom_call.1} parent=1 // pred_check
      _
    $region15: #{tpu_custom_call.1} parent=1 // pred_check_branch
      %21 = sbr.rel (0) target = $region17
    $region16: #{tpu_custom_call.1} parent=1 // pred_region
      _
    $region17: #{tpu_custom_call.1} parent=1 // pred_fallthru
      _
    // Predicated region
    $region18: #{tpu_custom_call.1} parent=1 // pred_check
      _
    $region19: #{tpu_custom_call.1} parent=1 // pred_check_branch
      %23 = sbr.rel (0) target = $region21
    $region20: #{tpu_custom_call.1} parent=1 // pred_region
      _
    $region21: #{tpu_custom_call.1} parent=1 // pred_fallthru
      _
    // Predicated region
    $region22: #{tpu_custom_call.1} parent=1 // pred_check
      _
    $region23: #{tpu_custom_call.1} parent=1 // pred_check_branch
      %25 = sbr.rel (0) target = $region25
    $region24: #{tpu_custom_call.1} parent=1 // pred_region
      _
    $region25: #{tpu_custom_call.1} parent=1 // pred_fallthru
      _
    // Predicated region
    $region26: #{tpu_custom_call.1} parent=1 // pred_check
      _
    $region27: #{tpu_custom_call.1} parent=1 // pred_check_branch
      %27 = sbr.rel (0) target = $region29
    $region28: #{tpu_custom_call.1} parent=1 // pred_region
      _
    $region29: #{tpu_custom_call.1} parent=1 // pred_fallthru
      _
    %v28 = vld [vmem:[%s0] sm:$0xff]
    %v29 = vld [vmem:[%s0 + $0x8] sm:$0xff]
    %v30 = vld [vmem:[%s0 + $0x10] sm:$0xff]
    %v31 = vld [vmem:[%s0 + $0x18] sm:$0xff]
    %v32 = vld [vmem:[%s1] sm:$0xff]
    %v33 = vld [vmem:[%s1 + $0x8] sm:$0xff]
    %v34 = vld [vmem:[%s1 + $0x10] sm:$0xff]
    %v35 = vld [vmem:[%s1 + $0x18] sm:$0xff]
    %v36 = vld [vmem:[%s2] sm:$0xff]
    %v37 = vld [vmem:[%s2 + $0x8] sm:$0xff]
    %v38 = vld [vmem:[%s2 + $0x10] sm:$0xff]
    %v39 = vld [vmem:[%s2 + $0x18] sm:$0xff]
    %41 = vset.pattern.permute.xlu0 0
    %42 = vperm.xlu0 %41, %v36
    %v43 = vpop.permute.xlu0 %42
    %46 = vset.pattern.permute.xlu0 0
    %47 = vperm.xlu0 %46, %v37
    %v48 = vpop.permute.xlu0 %47
    %51 = vset.pattern.permute.xlu0 0
    %52 = vperm.xlu0 %51, %v38
    %v53 = vpop.permute.xlu0 %52
    %56 = vset.pattern.permute.xlu0 0
    %57 = vperm.xlu0 %56, %v39
    %v58 = vpop.permute.xlu0 %57
    %vm60 = vcmask 130048
    %v62 = vsel %vm60, %v32, 0
    %v65 = vsel %vm60, %v33, 0
    %v68 = vsel %vm60, %v34, 0
    %v71 = vsel %vm60, %v35, 0
    %73 = vmatprep.subr.mxu0 %v29
    %74 = vmatpush1.msra.mxu0 %v28
    %75 = vmatprep.subr.mxu0 %v31
    %76 = vmatpush1.msra.mxu0 %v30
    %77 = vmatprep.subr.mxu0 0.0
    %78 = vmatpush1.msra.mxu0 0.0
    %79 = vmatprep.subr.mxu0 0.0
    %80 = vmatpush1.msra.mxu0 0.0
    %81 = vmatprep.subr.mxu0 0.0
    %82 = vmatpush1.msra.mxu0 0.0
    %83 = vmatprep.subr.mxu0 0.0
    %84 = vmatpush1.msra.mxu0 0.0
    %85 = vmatprep.subr.mxu0 0.0
    %86 = vmatpush1.msra.mxu0 0.0
    %87 = vmatprep.subr.mxu0 0.0
    %88 = vmatpush1.msra.mxu0 0.0
    %89 = vmatprep.subr.mxu0 0.0
    %90 = vmatpush1.msra.mxu0 0.0
    %91 = vmatprep.subr.mxu0 0.0
    %92 = vmatpush1.msra.mxu0 0.0
    %93 = vmatprep.subr.mxu0 0.0
    %94 = vmatpush1.msra.mxu0 0.0
    %95 = vmatprep.subr.mxu0 0.0
    %96 = vmatpush1.msra.mxu0 0.0
    %97 = vmatprep.subr.mxu0 0.0
    %98 = vmatpush1.msra.mxu0 0.0
    %99 = vmatprep.subr.mxu0 0.0
    %100 = vmatpush1.msra.mxu0 0.0
    %101 = vmatprep.subr.mxu0 0.0
    %102 = vmatpush1.msra.mxu0 0.0
    %103 = vmatprep.subr.mxu0 0.0
    %104 = vmatpush1.msra.mxu0 0.0
    %105 = vmatprep.subr.mxu0 0.0
    %106 = vmatpush1.msra.mxu0 0.0
    %107 = vmatprep.subr.mxu0 0.0
    %108 = vmatpush1.msra.mxu0 0.0
    %109 = vmatprep.subr.mxu0 0.0
    %110 = vmatpush1.msra.mxu0 0.0
    %111 = vmatprep.subr.mxu0 0.0
    %112 = vmatpush1.msra.mxu0 0.0
    %113 = vmatprep.subr.mxu0 0.0
    %114 = vmatpush1.msra.mxu0 0.0
    %115 = vmatprep.subr.mxu0 0.0
    %116 = vmatpush1.msra.mxu0 0.0
    %117 = vmatprep.subr.mxu0 0.0
    %118 = vmatpush1.msra.mxu0 0.0
    %119 = vmatprep.subr.mxu0 0.0
    %120 = vmatpush1.msra.mxu0 0.0
    %121 = vmatprep.subr.mxu0 0.0
    %122 = vmatpush1.msra.mxu0 0.0
    %123 = vmatprep.subr.mxu0 0.0
    %124 = vmatpush1.msra.mxu0 0.0
    %125 = vmatprep.subr.mxu0 0.0
    %126 = vmatpush1.msra.mxu0 0.0
    %127 = vmatprep.subr.mxu0 0.0
    %128 = vmatpush1.msra.mxu0 0.0
    %129 = vmatprep.subr.mxu0 0.0
    %130 = vmatpush1.msra.mxu0 0.0
    %131 = vmatprep.subr.mxu0 0.0
    %132 = vmatpush1.msra.mxu0 0.0
    %133 = vmatprep.subr.mxu0 0.0
    %134 = vmatpush1.msra.mxu0 0.0
    %135 = vmatprep.subr.mxu0 0.0
    %136 = vmatpush1.msra.mxu0 0.0
    %137 = vmatprep.mubr.f32.mxu0 0.0
    %138 = vmatmul.mubr.f32.gmra.mrb[0].mxu0 %v62
    %v139 = vpop.f32.mrb[0].mxu0
    %v140 = vadd.f32 %v43, %v139
    %v141 = vpop.f32.mrb[0].mxu0
    %v142 = vadd.f32 %v43, %v141
    %143 = vmatprep.mubr.f32.mxu0 0.0
    %144 = vmatmul.mubr.f32.gmra.mrb[0].mxu0 %v65
    %v145 = vpop.f32.mrb[0].mxu0
    %v146 = vadd.f32 %v48, %v145
    %v147 = vpop.f32.mrb[0].mxu0
    %v148 = vadd.f32 %v48, %v147
    %149 = vmatprep.mubr.f32.mxu0 0.0
    %150 = vmatmul.mubr.f32.gmra.mrb[0].mxu0 %v68
    %v151 = vpop.f32.mrb[0].mxu0
    %v152 = vadd.f32 %v53, %v151
    %v153 = vpop.f32.mrb[0].mxu0
    %v154 = vadd.f32 %v53, %v153
    %155 = vmatprep.mubr.f32.mxu0 0.0
    %156 = vmatmul.mubr.f32.gmra.mrb[0].mxu0 %v71
    %v157 = vpop.f32.mrb[0].mxu0
    %v158 = vadd.f32 %v58, %v157
    %v159 = vpop.f32.mrb[0].mxu0
    %v160 = vadd.f32 %v58, %v159
    %161 = vdwg.mxu0
    %v162 = vtanh.pop %v140
    %v163 = vtanh.pop %v142
    %v164 = vtanh.pop %v146
    %v165 = vtanh.pop %v148
    %v166 = vtanh.pop %v152
    %v167 = vtanh.pop %v154
    %v168 = vtanh.pop %v158
    %v169 = vtanh.pop %v160
    %v170 = vld [vmem:[%s3] sm:$0xff]
    %v171 = vld [vmem:[%s3 + $0x8] sm:$0xff]
    %v172 = vld [vmem:[%s3 + $0x10] sm:$0xff]
    %v173 = vld [vmem:[%s3 + $0x18] sm:$0xff]
    %v174 = vld [vmem:[%s4] sm:$0xff]
    %v175 = vld [vmem:[%s4 + $0x8] sm:$0xff]
    %v176 = vld [vmem:[%s4 + $0x10] sm:$0xff]
    %v177 = vld [vmem:[%s4 + $0x18] sm:$0xff]
    %179 = vset.pattern.permute.xlu0 0
    %180 = vperm.xlu0 %179, %v174
    %v181 = vpop.permute.xlu0 %180
    %184 = vset.pattern.permute.xlu0 0
    %185 = vperm.xlu0 %184, %v175
    %v186 = vpop.permute.xlu0 %185
    %189 = vset.pattern.permute.xlu0 0
    %190 = vperm.xlu0 %189, %v176
    %v191 = vpop.permute.xlu0 %190
    %194 = vset.pattern.permute.xlu0 0
    %195 = vperm.xlu0 %194, %v177
    %v196 = vpop.permute.xlu0 %195
    %vm198 = vcmask 261120
    %v200 = vsel %vm198, %v170, 0
    %v203 = vsel %vm198, %v171, 0
    %v206 = vsel %vm198, %v172, 0
    %v209 = vsel %vm198, %v173, 0
    %211 = vmatprep.subr.mxu0 %v163
    %212 = vmatpush1.msra.mxu0 %v162
    %213 = vmatprep.subr.mxu0 %v165
    %214 = vmatpush1.msra.mxu0 %v164
    %215 = vmatprep.subr.mxu0 %v167
    %216 = vmatpush1.msra.mxu0 %v166
    %217 = vmatprep.subr.mxu0 %v169
    %218 = vmatpush1.msra.mxu0 %v168
    %219 = vmatprep.subr.mxu0 0.0
    %220 = vmatpush1.msra.mxu0 0.0
    %221 = vmatprep.subr.mxu0 0.0
    %222 = vmatpush1.msra.mxu0 0.0
    %223 = vmatprep.subr.mxu0 0.0
    %224 = vmatpush1.msra.mxu0 0.0
    %225 = vmatprep.subr.mxu0 0.0
    %226 = vmatpush1.msra.mxu0 0.0
    %227 = vmatprep.subr.mxu0 0.0
    %228 = vmatpush1.msra.mxu0 0.0
    %229 = vmatprep.subr.mxu0 0.0
    %230 = vmatpush1.msra.mxu0 0.0
    %231 = vmatprep.subr.mxu0 0.0
    %232 = vmatpush1.msra.mxu0 0.0
    %233 = vmatprep.subr.mxu0 0.0
    %234 = vmatpush1.msra.mxu0 0.0
    %235 = vmatprep.subr.mxu0 0.0
    %236 = vmatpush1.msra.mxu0 0.0
    %237 = vmatprep.subr.mxu0 0.0
    %238 = vmatpush1.msra.mxu0 0.0
    %239 = vmatprep.subr.mxu0 0.0
    %240 = vmatpush1.msra.mxu0 0.0
    %241 = vmatprep.subr.mxu0 0.0
    %242 = vmatpush1.msra.mxu0 0.0
    %243 = vmatprep.subr.mxu0 0.0
    %244 = vmatpush1.msra.mxu0 0.0
    %245 = vmatprep.subr.mxu0 0.0
    %246 = vmatpush1.msra.mxu0 0.0
    %247 = vmatprep.subr.mxu0 0.0
    %248 = vmatpush1.msra.mxu0 0.0
    %249 = vmatprep.subr.mxu0 0.0
    %250 = vmatpush1.msra.mxu0 0.0
    %251 = vmatprep.subr.mxu0 0.0
    %252 = vmatpush1.msra.mxu0 0.0
    %253 = vmatprep.subr.mxu0 0.0
    %254 = vmatpush1.msra.mxu0 0.0
    %255 = vmatprep.subr.mxu0 0.0
    %256 = vmatpush1.msra.mxu0 0.0
    %257 = vmatprep.subr.mxu0 0.0
    %258 = vmatpush1.msra.mxu0 0.0
    %259 = vmatprep.subr.mxu0 0.0
    %260 = vmatpush1.msra.mxu0 0.0
    %261 = vmatprep.subr.mxu0 0.0
    %262 = vmatpush1.msra.mxu0 0.0
    %263 = vmatprep.subr.mxu0 0.0
    %264 = vmatpush1.msra.mxu0 0.0
    %265 = vmatprep.subr.mxu0 0.0
    %266 = vmatpush1.msra.mxu0 0.0
    %267 = vmatprep.subr.mxu0 0.0
    %268 = vmatpush1.msra.mxu0 0.0
    %269 = vmatprep.subr.mxu0 0.0
    %270 = vmatpush1.msra.mxu0 0.0
    %271 = vmatprep.subr.mxu0 0.0
    %272 = vmatpush1.msra.mxu0 0.0
    %273 = vmatprep.subr.mxu0 0.0
    %274 = vmatpush1.msra.mxu0 0.0
    %275 = vmatprep.mubr.f32.mxu0 0.0
    %276 = vmatmul.mubr.f32.gmra.mrb[0].mxu0 %v200
    %v277 = vpop.f32.mrb[0].mxu0
    %v278 = vadd.f32 %v181, %v277
    %v279 = vpop.f32.mrb[0].mxu0
    %v280 = vadd.f32 %v181, %v279
    %281 = vmatprep.mubr.f32.mxu0 0.0
    %282 = vmatmul.mubr.f32.gmra.mrb[0].mxu0 %v203
    %v283 = vpop.f32.mrb[0].mxu0
    %v284 = vadd.f32 %v186, %v283
    %v285 = vpop.f32.mrb[0].mxu0
    %v286 = vadd.f32 %v186, %v285
    %287 = vmatprep.mubr.f32.mxu0 0.0
    %288 = vmatmul.mubr.f32.gmra.mrb[0].mxu0 %v206
    %v289 = vpop.f32.mrb[0].mxu0
    %v290 = vadd.f32 %v191, %v289
    %v291 = vpop.f32.mrb[0].mxu0
    %v292 = vadd.f32 %v191, %v291
    %293 = vmatprep.mubr.f32.mxu0 0.0
    %294 = vmatmul.mubr.f32.gmra.mrb[0].mxu0 %v209
    %v295 = vpop.f32.mrb[0].mxu0
    %v296 = vadd.f32 %v196, %v295
    %v297 = vpop.f32.mrb[0].mxu0
    %v298 = vadd.f32 %v196, %v297
    %299 = vdwg.mxu0
    %v300 = vtanh.pop %v278
    %v301 = vtanh.pop %v280
    %v302 = vtanh.pop %v284
    %v303 = vtanh.pop %v286
    %v304 = vtanh.pop %v290
    %v305 = vtanh.pop %v292
    %v306 = vtanh.pop %v296
    %v307 = vtanh.pop %v298
    %v308 = vld [vmem:[%s5] sm:$0xff]
    %v309 = vld [vmem:[%s5 + $0x8] sm:$0xff]
    %v310 = vld [vmem:[%s5 + $0x10] sm:$0xff]
    %v311 = vld [vmem:[%s5 + $0x18] sm:$0xff]
    %313 = vset.pattern.permute.xlu0 0
    %314 = vperm.xlu0 %313, %v308
    %v315 = vpop.permute.xlu0 %314
    %318 = vset.pattern.permute.xlu0 0
    %319 = vperm.xlu0 %318, %v309
    %v320 = vpop.permute.xlu0 %319
    %323 = vset.pattern.permute.xlu0 0
    %324 = vperm.xlu0 %323, %v310
    %v325 = vpop.permute.xlu0 %324
    %328 = vset.pattern.permute.xlu0 0
    %329 = vperm.xlu0 %328, %v311
    %v330 = vpop.permute.xlu0 %329
    %v332 = vmul.f32 %v315, %v300
    %v333 = vmul.f32 %v315, %v301
    %v334 = vmul.f32 %v320, %v302
    %v335 = vmul.f32 %v320, %v303
    %v336 = vmul.f32 %v325, %v304
    %v337 = vmul.f32 %v325, %v305
    %v338 = vmul.f32 %v330, %v306
    %v339 = vmul.f32 %v330, %v307
    %v340 = vadd.f32 %v332, %v334
    %v341 = vadd.f32 %v340, %v336
    %v342 = vadd.f32 %v341, %v338
    %v343 = vrot.slane %v342, 4
    %v344 = vadd.f32 %v342, %v343
    %v345 = vrot.slane %v344, 2
    %v346 = vadd.f32 %v344, %v345
    %v347 = vrot.slane %v346, 1
    %v348 = vadd.f32 %v346, %v347
    %v349 = vadd.f32 %v333, %v335
    %v350 = vadd.f32 %v349, %v337
    %v351 = vadd.f32 %v350, %v339
    %v352 = vrot.slane %v351, 4
    %v353 = vadd.f32 %v351, %v352
    %v354 = vrot.slane %v353, 2
    %v355 = vadd.f32 %v353, %v354
    %v356 = vrot.slane %v355, 1
    %v357 = vadd.f32 %v355, %v356
    %s358 = sld [smem:[#allocation2]]
    %v359 = vstv %s358
    %v360 = vadd.f32 %v348, %v359
    %v361 = vadd.f32 %v357, %v359
    %v364 = vcombine.low %v360, %v361
    %v366 = vunpack.c.l.s4 1966171168
    %v367 = vunpack.c.0.s8 %v366
    %v368 = vlaneseq
    %v369 = vshrl.u32 %v368, 7
    %v370 = vsub.s32 %v367, %v369
    %v371 = vrot.slane %v364, %v370
    %v373 = vunpack.c.l.s4 1966171168
    %v374 = vunpack.c.0.s8 %v373
    %v375 = vlaneseq
    %v376 = vshrl.u32 %v375, 7
    %v377 = vsub.s32 %v374, %v376
    %v378 = vrot.slane %v371, %v377
    %v380 = vlaneseq
    %vm381 = vcmp.ge.s32.totalorder %v380, 0
    %vm382 = vcmp.lt.s32.totalorder %v380, 256
    %vm383 = vmand %vm381, %vm382
    %384 = vst.msk [vmem:[#allocation3] sm:$0x3] %vm383, %v378
    // Predicated region
    $region30: #{tpu_custom_call.1} parent=1 // pred_check
      _
    $region31: #{tpu_custom_call.1} parent=1 // pred_check_branch
      %386 = sbr.rel (0) target = $region33
    $region32: #{tpu_custom_call.1} parent=1 // pred_region
      %s388 = ssub.s32 32, 32
      %389 = vsyncadd [#allocation4], %s388
      %s391 = sshll.u32 [#allocation3], 4
      %s392 = int_to_ptr.vmem [resolvable:$true] %s391
      %394 = dma.vmem_to_hbm [thread:$0]  %s392, 32, %s7, [#allocation4]
    $region33: #{tpu_custom_call.1} parent=1 // pred_fallthru
      _
    // Predicated region
    $region34: #{tpu_custom_call.1} parent=1 // pred_check
      _
    $region35: #{tpu_custom_call.1} parent=1 // pred_check_branch
      %396 = sbr.rel (0) target = $region37
    $region36: #{tpu_custom_call.1} parent=1 // pred_region
      %397 = dma.done [#allocation4], 32
    $region37: #{tpu_custom_call.1} parent=1 // pred_fallthru
      _
    %398 = vsyncpa [#allocation4], 1

</llo_original>
